<compile_context>
chip_gen: v7x
topology: tpu7x:2x2x1
jax: 0.10.0
libtpu: 0.0.40
codegen_flags: <defaults>
</compile_context>

<pallas_src>
import functools

import jax
import jax.numpy as jnp
from jax.experimental import pallas as pl
from jax.experimental.pallas import tpu as pltpu

MARGIN = 2.0
EPS = 1e-6  # F.pairwise_distance default eps (added to the elementwise difference)


def _contrastive_loss_kernel(x1_ref, x2_ref, lbl_ref, out_ref, *, batch, margin, tile_b):
    # x1_ref, x2_ref: (TB, D) VMEM (native dtype); lbl_ref: (TB, 1) VMEM; out_ref: (1, 1) SMEM f32
    i = pl.program_id(0)

    @pl.when(i == 0)
    def _init():
        out_ref[0, 0] = jnp.float32(0.0)

    # Upcast in-register; HBM traffic stays at the native dtype (e.g. bf16 halves bytes read).
    x1 = x1_ref[...].astype(jnp.float32)
    x2 = x2_ref[...].astype(jnp.float32)
    lbl = lbl_ref[...].astype(jnp.float32)                      # (TB, 1)

    # Mask tail rows of the last (possibly partial) batch tile.
    row = i * tile_b + jax.lax.broadcasted_iota(jnp.int32, (tile_b, 1), 0)
    valid = row < batch                                         # (TB, 1)

    # torch.pairwise_distance adds eps to the difference BEFORE the norm (intentional quirk).
    diff = jnp.where(valid, (x1 - x2) + EPS, 0.0)               # (TB, D)
    lbl = jnp.where(valid, lbl, 0.0)

    sumsq = jnp.sum(diff * diff, axis=1, keepdims=True)         # (TB, 1)  -- XLU reduction
    dist = jnp.sqrt(sumsq)                                      # only needed for the margin term
    pos = (1.0 - lbl) * sumsq                                   # d^2 without the sqrt round-trip
    neg = lbl * jnp.square(jnp.maximum(margin - dist, 0.0))

    out_ref[0, 0] += jnp.sum(pos + neg)

    @pl.when(i == pl.num_programs(0) - 1)
    def _finalize():
        out_ref[0, 0] = out_ref[0, 0] / jnp.float32(batch)


def contrastive_loss(output1, output2, label, *, margin=MARGIN, tile_b=None,
                     vmem_budget_bytes=8 << 20):
    """Mean contrastive loss; returns a scalar f32."""
    B, D = output1.shape
    itemsize = max(jnp.dtype(output1.dtype).itemsize, jnp.dtype(output2.dtype).itemsize)

    if tile_b is None:
        # 2 inputs x 2 pipeline buffers x TB*D*itemsize within the (conservative, all-gen) budget.
        tb = max(8, vmem_budget_bytes // (4 * D * itemsize))
        tb = min(tb, 1024)
        tb = (tb // 8) * 8
        if tb >= B:
            tb = B  # single full-extent block is always a legal block shape
    else:
        tb = tile_b
    grid = (pl.cdiv(B, tb),)

    label2d = label.reshape(B, 1)

    kernel = functools.partial(
        _contrastive_loss_kernel, batch=B, margin=float(margin), tile_b=tb)

    bytes_accessed = (output1.size * jnp.dtype(output1.dtype).itemsize
                      + output2.size * jnp.dtype(output2.dtype).itemsize
                      + label2d.size * jnp.dtype(label2d.dtype).itemsize
                      + 4)
    cost = pl.CostEstimate(flops=3 * B * D, transcendentals=B, bytes_accessed=bytes_accessed)

    out = pl.pallas_call(
        kernel,
        out_shape=jax.ShapeDtypeStruct((1, 1), jnp.float32),
        grid_spec=pltpu.PrefetchScalarGridSpec(
            num_scalar_prefetch=0,
            grid=grid,
            in_specs=[
                pl.BlockSpec((tb, D), lambda i: (i, 0)),
                pl.BlockSpec((tb, D), lambda i: (i, 0)),
                pl.BlockSpec((tb, 1), lambda i: (i, 0)),
            ],
            out_specs=pl.BlockSpec(memory_space=pltpu.SMEM),  # resident scalar accumulator
        ),
        compiler_params=pltpu.CompilerParams(
            dimension_semantics=("arbitrary",),  # batch axis carries the accumulator
        ),
        cost_estimate=cost,
    )(output1, output2, label2d)
    # TODO(synk): on v7x (2 TCs) a leading 'parallel' core axis with per-core partial sums
    # would stream both halves of HBM concurrently; single-core reduction kept for simplicity.
    return out[0, 0]


def _reference(output1, output2, label, margin=MARGIN):
    # Pure-JAX reference mirroring the PyTorch semantics (eps inside the norm).
    o1 = output1.astype(jnp.float32)
    o2 = output2.astype(jnp.float32)
    d = jnp.sqrt(jnp.sum(jnp.square(o1 - o2 + EPS), axis=1))
    return jnp.mean((1.0 - label) * jnp.square(d)
                    + label * jnp.square(jnp.clip(margin - d, 0.0, None)))


if __name__ == "__main__":
    key = jax.random.PRNGKey(0)

    # Case 1: small shapes consistent with the module (single block path).
    k1, k2, k3 = jax.random.split(key, 3)
    B, D = 8, 32
    output1 = jax.random.normal(k1, (B, D), dtype=jnp.float32)
    output2 = jax.random.normal(k2, (B, D), dtype=jnp.float32)
    label = jax.random.bernoulli(k3, 0.5, (B,)).astype(jnp.float32)

    loss = contrastive_loss(output1, output2, label)
    jax.block_until_ready(loss)
    ref = _reference(output1, output2, label)
    assert jnp.allclose(loss, ref, rtol=1e-5, atol=1e-5), (loss, ref)

    # Case 2: exercise multi-tile accumulation + tail masking (B not divisible by tile).
    k4, k5, k6 = jax.random.split(jax.random.PRNGKey(1), 3)
    B2, D2 = 20, 32
    o1 = jax.random.normal(k4, (B2, D2), dtype=jnp.float32)
    o2 = jax.random.normal(k5, (B2, D2), dtype=jnp.float32)
    lbl2 = jax.random.bernoulli(k6, 0.5, (B2,)).astype(jnp.float32)

    loss2 = contrastive_loss(o1, o2, lbl2, tile_b=8)
    jax.block_until_ready(loss2)
    ref2 = _reference(o1, o2, lbl2)
    assert jnp.allclose(loss2, ref2, rtol=1e-5, atol=1e-5), (loss2, ref2)

    print("KERNEL_OK")
</pallas_src>

<mosaic_0001>
module attributes {stable_mosaic.version = 11 : i64} {
  func.func @_contrastive_loss_kernel(%arg0: i32, %arg1: memref<8x32xf32, #tpu.memory_space<vmem>>, %arg2: memref<8x32xf32, #tpu.memory_space<vmem>>, %arg3: memref<8x1xf32, #tpu.memory_space<vmem>>, %arg4: memref<1x1xf32, #tpu.memory_space<smem>>) attributes {dimension_semantics = [#tpu.dimension_semantics<arbitrary>], iteration_bounds = array<i64: 1>, scalar_prefetch = 0 : i64, scratch_operands = 0 : i64, tpu.core_type = #tpu.core_type<tc>, window_params = [{transform_indices = @transform_0, window_bounds = array<i64: 8, 32>}, {transform_indices = @transform_1, window_bounds = array<i64: 8, 32>}, {transform_indices = @transform_2, window_bounds = array<i64: 8, 1>}, {transform_indices = @transform_3, window_bounds = array<i64: 1, 1>}]} {
    %c0_i32 = arith.constant 0 : i32
    %0 = arith.cmpi eq, %arg0, %c0_i32 : i32
    %1 = arith.extui %0 : i1 to i32
    %c0_i32_0 = arith.constant 0 : i32
    %2 = arith.cmpi ne, %1, %c0_i32_0 : i32
    scf.if %2 {
      %cst_20 = arith.constant 0.000000e+00 : f32
      %c0_21 = arith.constant 0 : index
      %c0_22 = arith.constant 0 : index
      %45 = memref.load %arg4[%c0_21, %c0_22] : memref<1x1xf32, #tpu.memory_space<smem>>
      memref.store %cst_20, %arg4[%c0_21, %c0_22] : memref<1x1xf32, #tpu.memory_space<smem>>
    } else {
    }
    %c0 = arith.constant 0 : index
    %c0_1 = arith.constant 0 : index
    %3 = vector.load %arg1[%c0, %c0_1] : memref<8x32xf32, #tpu.memory_space<vmem>>, vector<8x32xf32>
    %c0_2 = arith.constant 0 : index
    %c0_3 = arith.constant 0 : index
    %4 = vector.load %arg2[%c0_2, %c0_3] : memref<8x32xf32, #tpu.memory_space<vmem>>, vector<8x32xf32>
    %c0_4 = arith.constant 0 : index
    %c0_5 = arith.constant 0 : index
    %5 = vector.load %arg3[%c0_4, %c0_5] : memref<8x1xf32, #tpu.memory_space<vmem>>, vector<8x1xf32>
    %c8_i32 = arith.constant 8 : i32
    %6 = arith.muli %arg0, %c8_i32 : i32
    %7 = tpu.iota {dimensions = array<i32: 0>} : vector<8x1xi32>
    %8 = vector.broadcast %6 : i32 to vector<8x1xi32>
    %9 = arith.addi %8, %7 : vector<8x1xi32>
    %c8_i32_6 = arith.constant 8 : i32
    %10 = vector.broadcast %c8_i32_6 : i32 to vector<8x1xi32>
    %11 = arith.cmpi slt, %9, %10 : vector<8x1xi32>
    %12 = arith.subf %3, %4 : vector<8x32xf32>
    %cst = arith.constant 9.99999997E-7 : f32
    %13 = vector.broadcast %cst : f32 to vector<8x32xf32>
    %14 = arith.addf %12, %13 : vector<8x32xf32>
    %cst_7 = arith.constant 0.000000e+00 : f32
    %15 = vector.shape_cast %11 : vector<8x1xi1> to vector<8x1xi1>
    %16 = vector.broadcast %15 : vector<8x1xi1> to vector<8x32xi1>
    %17 = vector.broadcast %cst_7 : f32 to vector<8x32xf32>
    %18 = arith.select %16, %14, %17 : vector<8x32xi1>, vector<8x32xf32>
    %cst_8 = arith.constant 0.000000e+00 : f32
    %19 = vector.broadcast %cst_8 : f32 to vector<8x1xf32>
    %20 = arith.select %11, %5, %19 : vector<8x1xi1>, vector<8x1xf32>
    %21 = arith.mulf %18, %18 : vector<8x32xf32>
    %cst_9 = arith.constant dense<0.000000e+00> : vector<8xf32>
    %22 = vector.multi_reduction <add>, %21, %cst_9 [1] : vector<8x32xf32> to vector<8xf32>
    %23 = vector.shape_cast %22 : vector<8xf32> to vector<8x1xf32>
    %24 = math.sqrt %23 : vector<8x1xf32>
    %cst_10 = arith.constant 1.000000e+00 : f32
    %25 = vector.broadcast %cst_10 : f32 to vector<8x1xf32>
    %26 = arith.subf %25, %20 : vector<8x1xf32>
    %27 = arith.mulf %26, %23 : vector<8x1xf32>
    %cst_11 = arith.constant 2.000000e+00 : f32
    %28 = vector.broadcast %cst_11 : f32 to vector<8x1xf32>
    %29 = arith.subf %28, %24 : vector<8x1xf32>
    %cst_12 = arith.constant 0.000000e+00 : f32
    %30 = vector.broadcast %cst_12 : f32 to vector<8x1xf32>
    %31 = arith.maximumf %29, %30 : vector<8x1xf32>
    %32 = arith.mulf %31, %31 : vector<8x1xf32>
    %33 = arith.mulf %20, %32 : vector<8x1xf32>
    %c0_13 = arith.constant 0 : index
    %c0_14 = arith.constant 0 : index
    %34 = memref.load %arg4[%c0_13, %c0_14] : memref<1x1xf32, #tpu.memory_space<smem>>
    %35 = arith.addf %27, %33 : vector<8x1xf32>
    %36 = vector.shape_cast %35 : vector<8x1xf32> to vector<1x8x1xf32>
    %cst_15 = arith.constant dense<0.000000e+00> : vector<1xf32>
    %37 = vector.multi_reduction <add>, %36, %cst_15 [1, 2] : vector<1x8x1xf32> to vector<1xf32>
    %38 = vector.shape_cast %37 : vector<1xf32> to vector<1x1x1xf32>
    %39 = vector.extract %38[0, 0, 0] : f32 from vector<1x1x1xf32>
    %40 = arith.addf %34, %39 : f32
    %c0_16 = arith.constant 0 : index
    %c0_17 = arith.constant 0 : index
    %41 = memref.load %arg4[%c0_16, %c0_17] : memref<1x1xf32, #tpu.memory_space<smem>>
    memref.store %40, %arg4[%c0_16, %c0_17] : memref<1x1xf32, #tpu.memory_space<smem>>
    %c0_i32_18 = arith.constant 0 : i32
    %42 = arith.cmpi eq, %arg0, %c0_i32_18 : i32
    %43 = arith.extui %42 : i1 to i32
    %c0_i32_19 = arith.constant 0 : i32
    %44 = arith.cmpi ne, %43, %c0_i32_19 : i32
    scf.if %44 {
      %c0_20 = arith.constant 0 : index
      %c0_21 = arith.constant 0 : index
      %45 = memref.load %arg4[%c0_20, %c0_21] : memref<1x1xf32, #tpu.memory_space<smem>>
      %cst_22 = arith.constant 8.000000e+00 : f32
      %46 = arith.divf %45, %cst_22 : f32
      %c0_23 = arith.constant 0 : index
      %c0_24 = arith.constant 0 : index
      %47 = memref.load %arg4[%c0_23, %c0_24] : memref<1x1xf32, #tpu.memory_space<smem>>
      memref.store %46, %arg4[%c0_23, %c0_24] : memref<1x1xf32, #tpu.memory_space<smem>>
    } else {
    }
    return
  }
  func.func @transform_0(%arg0: i32) -> (i32, i32) {
    %c0_i32 = arith.constant 0 : i32
    %c0_i32_0 = arith.constant 0 : i32
    return %arg0, %c0_i32 : i32, i32
  }
  func.func @transform_1(%arg0: i32) -> (i32, i32) {
    %c0_i32 = arith.constant 0 : i32
    %c0_i32_0 = arith.constant 0 : i32
    return %arg0, %c0_i32 : i32, i32
  }
  func.func @transform_2(%arg0: i32) -> (i32, i32) {
    %c0_i32 = arith.constant 0 : i32
    %c0_i32_0 = arith.constant 0 : i32
    return %arg0, %c0_i32 : i32, i32
  }
  func.func @transform_3(%arg0: i32) -> (i32, i32) {
    %c0_i32 = arith.constant 0 : i32
    %c0_i32_0 = arith.constant 0 : i32
    %c0_i32_1 = arith.constant 0 : i32
    return %c0_i32, %c0_i32_0 : i32, i32
  }
}

</mosaic_0001>

<llo_original>
// kernel: tpu_custom_call.1
$region0: #{tpu_custom_call.1}
  #allocation0 [shape = 'u32[]', space=smem, size = 0x4, offset = 0x4, fixed_abs, tag = 'smem constant byte address 0x4 - core index']
  #allocation1 [shape = 'u32[144,128]{1,0:T(1,128)}', space=vmem, size = 0x12000, scoped, tag = 'internal scratch']
  %s0 = inlined_call_operand.vmem [shape: f32[8,32], index: 0, kind: input, shape index: {}]
  %s1 = inlined_call_operand.hbm [shape: f32[8,32], index: 1, kind: input, shape index: {}]
  %s2 = inlined_call_operand.vmem [shape: f32[8,1], index: 2, kind: input, shape index: {}]
  %s3 = inlined_call_operand.hbm [shape: f32[1,1], index: 3, kind: output, shape index: {}]
  %s4 = sld [smem:[#allocation0]]
  $region34: #{tpu_custom_call.1} parent=0
    _
  %s6 = ssub.s32 1, %s4
  %s7 = scalar_select 0, %s6, %s4
  $region1: #{tpu_custom_call.1} parent=0
    #allocation2 [shape = 'u8[4096]{0}', space=vmem, size = 0x1000, scoped, tag = 'input window, operand 1, single buffered']
    #allocation3 [shape = 's32[1]{0}', space=sflag, size = 0x4, scoped, tag = 'scoped memory for tpu_custom_call.1']
    #allocation4 [shape = 's32[1]{0}', space=sflag, size = 0x4, scoped, tag = 'scoped memory for tpu_custom_call.1']
    #allocation5 [shape = 'u8[512]{0}', space=smem, size = 0x200, scoped, tag = 'output window, operand 0, single buffered']
    %8 = vsyncpa [#allocation3], 0
    %9 = vsyncpa [#allocation4], 0
    // Predicated region
    $region2: #{tpu_custom_call.1} parent=1 // pred_check
      _
    $region3: #{tpu_custom_call.1} parent=1 // pred_check_branch
      %11 = sbr.rel (0) target = $region5
    $region4: #{tpu_custom_call.1} parent=1 // pred_region
      _
    $region5: #{tpu_custom_call.1} parent=1 // pred_fallthru
      _
    // Predicated region
    $region6: #{tpu_custom_call.1} parent=1 // pred_check
      _
    $region7: #{tpu_custom_call.1} parent=1 // pred_check_branch
      %13 = sbr.rel (0) target = $region9
    $region8: #{tpu_custom_call.1} parent=1 // pred_region
      %s15 = ssub.s32 128, 128
      %16 = vsyncadd [#allocation3], %s15
      %s18 = sshll.u32 [#allocation2], 4
      %s19 = int_to_ptr.vmem [resolvable:$true] %s18
      %21 = dma.hbm_to_vmem [thread:$0]  %s1, 128, %s19, [#allocation3]
    $region9: #{tpu_custom_call.1} parent=1 // pred_fallthru
      _
    // Predicated region
    $region10: #{tpu_custom_call.1} parent=1 // pred_check
      _
    $region11: #{tpu_custom_call.1} parent=1 // pred_check_branch
      %23 = sbr.rel (0) target = $region13
    $region12: #{tpu_custom_call.1} parent=1 // pred_region
      _
    $region13: #{tpu_custom_call.1} parent=1 // pred_fallthru
      _
    // Predicated region
    $region14: #{tpu_custom_call.1} parent=1 // pred_check
      _
    $region15: #{tpu_custom_call.1} parent=1 // pred_check_branch
      %25 = sbr.rel (0) target = $region17
    $region16: #{tpu_custom_call.1} parent=1 // pred_region
      %26 = dma.done [#allocation3], 128
    $region17: #{tpu_custom_call.1} parent=1 // pred_fallthru
      _
    %p27 = scmp.eq.s32.totalorder 0, 0
    // Predicated region
    $region18: #{tpu_custom_call.1} parent=1 // pred_check
      %p28 = pneg %p27
    $region19: #{tpu_custom_call.1} parent=1 // pred_check_branch
      %30 = sbr.rel (%p28) target = $region21
    $region20: #{tpu_custom_call.1} parent=1 // pred_region
      %s31 = scalar_lea.smem [#allocation5], 0
      %32 = sst [smem:[%s31]] 0.0
    $region21: #{tpu_custom_call.1} parent=1 // pred_fallthru
      _
    %v33 = vld [vmem:[%s0] sm:$0xff]
    %v34 = vld [vmem:[#allocation2] sm:$0xff]
    %v35 = vld [vmem:[%s2] sm:$0xff]
    %s36 = smul.u32 0, 8
    %v37 = vlaneseq
    %v38 = vshrl.u32 %v37, 7
    %v39 = vstv %s36
    %v40 = vadd.s32 %v39, %v38
    %vm41 = vcmp.lt.s32.totalorder %v40, 8
    %v42 = vsub.f32 %v33, %v34
    %v43 = vadd.f32 %v42, 1e-06
    %v44 = vsel %vm41, 1, 0
    %vm45 = vcmp.eq.s32.totalorder %v44, 1
    %v46 = vsel %vm45, %v43, 0.0
    %v47 = vsel %vm41, %v35, 0.0
    %v48 = vmul.f32 %v46, %v46
    %vm49 = vcmask 261120
    %v50 = vsel %vm49, %v48, 0.0
    %51 = vadd.xlane.f32.xlu0 %v50
    %v52 = vpop.xlane.xlu0 %51
    %v53 = vrsqrt.pop %v52
    %v54 = vmul.f32 %v52, %v53
    %vm55 = vcmp.eq.f32.partialorder %v52, inf
    %v56 = vsel %vm55, %v52, %v54
    %vm57 = vcmp.eq.f32.partialorder %v52, 0.0
    %v58 = vand.u32 %v52, 2147483648
    %v59 = vsel %vm57, %v58, %v56
    %v60 = vsub.f32 1.0, %v47
    %v61 = vmul.f32 %v60, %v52
    %v62 = vsub.f32 2.0, %v59
    %v63 = vmax.f32 %v62, 0.0
    %v64 = vmul.f32 %v63, %v63
    %v65 = vmul.f32 %v47, %v64
    %s66 = sld [smem:[#allocation5]]
    %v67 = vadd.f32 %v61, %v65
    %vm68 = vcmask 7168
    %v69 = vsel %vm68, %v67, 0.0
    %70 = vadd.xlane.f32.xlu0 %v69
    %v71 = vpop.xlane.xlu0 %70
    %v72 = vrot.slane %v71, 4
    %v73 = vadd.f32 %v71, %v72
    %v74 = vrot.slane %v73, 2
    %v75 = vadd.f32 %v73, %v74
    %v76 = vrot.slane %v75, 1
    %v77 = vadd.f32 %v75, %v76
    %s78 = vtos %v77
    %s79 = sadd.f32 %s66, %s78
    %s80 = scalar_lea.smem [#allocation5], 0
    %81 = sst [smem:[%s80]] %s79
    // Predicated region
    $region22: #{tpu_custom_call.1} parent=1 // pred_check
      %p82 = pneg %p27
    $region23: #{tpu_custom_call.1} parent=1 // pred_check_branch
      %84 = sbr.rel (%p82) target = $region25
    $region24: #{tpu_custom_call.1} parent=1 // pred_region
      %s85 = sld [smem:[#allocation5]]
      %v86 = vrcp.pop 8.0
      %s87 = vtos %v86
      %s88 = smul.f32 %s85, %s87
      %89 = sst [smem:[%s80]] %s88
    $region25: #{tpu_custom_call.1} parent=1 // pred_fallthru
      _
    // Predicated region
    $region26: #{tpu_custom_call.1} parent=1 // pred_check
      _
    $region27: #{tpu_custom_call.1} parent=1 // pred_check_branch
      %91 = sbr.rel (0) target = $region29
    $region28: #{tpu_custom_call.1} parent=1 // pred_region
      %s93 = ssub.s32 16, 16
      %94 = vsyncadd [#allocation4], %s93
      %97 = dma.smem_to_hbm [#allocation5], 16, %s3, [#allocation4]
    $region29: #{tpu_custom_call.1} parent=1 // pred_fallthru
      _
    // Predicated region
    $region30: #{tpu_custom_call.1} parent=1 // pred_check
      _
    $region31: #{tpu_custom_call.1} parent=1 // pred_check_branch
      %99 = sbr.rel (0) target = $region33
    $region32: #{tpu_custom_call.1} parent=1 // pred_region
      %100 = dma.done [#allocation4], 16
    $region33: #{tpu_custom_call.1} parent=1 // pred_fallthru
      _
    %101 = sfence
    %102 = vsyncpa [#allocation3], 1
    %103 = vsyncpa [#allocation4], 1

</llo_original>
